<compile_context>
chip_gen: v7x
topology: tpu7x:2x2x1
jax: 0.10.0
libtpu: 0.0.40
codegen_flags: <defaults>
</compile_context>

<pallas_src>
import math

import jax
import jax.numpy as jnp
from jax.experimental import pallas as pl
from jax.experimental.pallas import tpu as pltpu


def _gelu_tanh(x):
    # GELU(approximate='tanh')
    c = math.sqrt(2.0 / math.pi)
    return 0.5 * x * (1.0 + jnp.tanh(c * (x + 0.044715 * x * x * x)))


def _layernorm(x, gamma, beta, eps=1e-5):
    # x: (T, C); gamma, beta: (C,); stats in f32
    mean = jnp.mean(x, axis=-1, keepdims=True)
    var = jnp.mean((x - mean) ** 2, axis=-1, keepdims=True)
    xhat = (x - mean) * jax.lax.rsqrt(var + eps)
    return xhat * gamma + beta


def _tile(n, cap, align):
    """Largest multiple-of-`align` divisor of n that is <= cap; n itself if
    n <= cap or no aligned divisor exists (full dims are always legal)."""
    if n <= cap:
        return n
    t = cap - cap % align
    while t >= align:
        if n % t == 0:
            return t
        t -= align
    return n


# ---------------------------------------------------------------------------
# Kernel 1: fused LayerNorm1 + QKV projection.  3C output dim is tiled so the
# (C, 3C) weight never has to be fully resident/double-buffered in VMEM.
# ---------------------------------------------------------------------------
def ln_qkv_kernel(x_ref, g_ref, b_ref, w_ref, bias_ref, o_ref):
    x = x_ref[0].astype(jnp.float32)                      # (tt, C)
    h = _layernorm(x, g_ref[0], b_ref[0])                 # (tt, C) f32
    o_ref[0] = (jnp.dot(h.astype(jnp.bfloat16), w_ref[...],
                        preferred_element_type=jnp.float32)
                + bias_ref[0]).astype(o_ref.dtype)        # (tt, tn) bf16


# ---------------------------------------------------------------------------
# Kernel 2: flash attention (online softmax over KV tiles, heads batched,
# causal tile skipping) + single full-C out-projection + residual 1.
# ---------------------------------------------------------------------------
def _make_attn_kernel(causal):
    def attn_kernel(x_ref, q_ref, k_ref, v_ref, mask_ref, wao_ref, bao_ref,
                    o_ref, m_scr, l_scr, acc_scr):
        qi = pl.program_id(1)
        ki = pl.program_id(2)
        nk = pl.num_programs(2)
        tq = q_ref.shape[2]
        tk = k_ref.shape[2]

        @pl.when(ki == 0)
        def _init():
            m_scr[...] = jnp.full(m_scr.shape, -jnp.inf, m_scr.dtype)
            l_scr[...] = jnp.zeros(l_scr.shape, l_scr.dtype)
            acc_scr[...] = jnp.zeros(acc_scr.shape, acc_scr.dtype)

        def _update():
            q = q_ref[0]                           # (nh, tq, hd) bf16, pre-scaled
            k = k_ref[0]                           # (nh, tk, hd) bf16
            v = v_ref[0]                           # (nh, tk, hd) bf16
            s = jnp.einsum('hqd,hkd->hqk', q, k,
                           preferred_element_type=jnp.float32)   # (nh, tq, tk)
            s = s + mask_ref[0].astype(jnp.float32)              # additive FIRE mask
            m_prev = m_scr[...]                                  # (nh, tq, 1)
            m_new = jnp.maximum(m_prev, jnp.max(s, axis=-1, keepdims=True))
            alpha = jnp.exp(m_prev - m_new)
            p = jnp.exp(s - m_new)
            l_scr[...] = alpha * l_scr[...] + jnp.sum(p, axis=-1, keepdims=True)
            acc_scr[...] = alpha * acc_scr[...] + jnp.einsum(
                'hqk,hkd->hqd', p.astype(jnp.bfloat16), v,
                preferred_element_type=jnp.float32)              # (nh, tq, hd)
            m_scr[...] = m_new

        if causal:
            # KV tile is needed iff its first column <= last query row of the tile.
            pl.when(ki * tk < (qi + 1) * tq)(_update)
        else:
            _update()

        @pl.when(ki == nk - 1)
        def _finalize():
            nh, tq_, hd = acc_scr.shape
            inv_l = pl.reciprocal(l_scr[...], approx=True)       # (nh, tq, 1)
            y_h = (acc_scr[...] * inv_l).astype(jnp.bfloat16)    # (nh, tq, hd)
            # heads -> lanes merge (once per q tile), then one (tq,C)@(C,C) matmul
            y2 = jnp.concatenate([y_h[h] for h in range(nh)], axis=-1)  # (tq, C)
            y = jnp.dot(y2, wao_ref[...],
                        preferred_element_type=jnp.float32) + bao_ref[0]
            o_ref[0] = (x_ref[0].astype(jnp.float32) + y).astype(o_ref.dtype)

    return attn_kernel


# ---------------------------------------------------------------------------
# Kernel 3: LayerNorm2 + MLP (FC -> GELU -> proj) + residual 2, with the 4C
# feed-forward dim as a reduction grid axis (W_fc/W_mo streamed block-wise,
# (tt, C) f32 accumulator; the (tt, 4C) activation is never materialized).
# ---------------------------------------------------------------------------
def ln_mlp_kernel(x1_ref, g_ref, b_ref, wfc_ref, bfc_ref, wmo_ref, bmo_ref,
                  o_ref, h_scr, acc_scr):
    j = pl.program_id(2)
    nj = pl.num_programs(2)

    @pl.when(j == 0)
    def _init():
        x1 = x1_ref[0].astype(jnp.float32)                       # (tt, C)
        h_scr[...] = _layernorm(x1, g_ref[0], b_ref[0]).astype(h_scr.dtype)
        acc_scr[...] = jnp.zeros(acc_scr.shape, acc_scr.dtype)

    f = jnp.dot(h_scr[...], wfc_ref[...],
                preferred_element_type=jnp.float32) + bfc_ref[0]  # (tt, tff)
    f = _gelu_tanh(f)
    acc_scr[...] += jnp.dot(f.astype(jnp.bfloat16), wmo_ref[...],
                            preferred_element_type=jnp.float32)   # (tt, C)

    @pl.when(j == nj - 1)
    def _fin():
        o_ref[0] = (x1_ref[0].astype(jnp.float32) + acc_scr[...]
                    + bmo_ref[0]).astype(o_ref.dtype)


def gpt2_block(x, fire_causal_mask, params, n_head, *,
               q_tile=128, kv_tile=128, qkv_out_tile=512, ff_tile=512,
               vmem_limit=48 * 1024 * 1024, causal=True):
    """Forward pass of the GPT-2 Block.  `causal=True` enables tile skipping
    and assumes the additive mask is causal (as the FIRE causal mask is)."""
    B, T, C = x.shape
    nh = n_head
    hd = C // nh
    scale = 1.0 / math.sqrt(hd)
    bf16 = jnp.bfloat16

    # ---- one-time parameter prep (layout plumbing, outside the kernels) ----
    # fold the 1/sqrt(hd) attention scale into the q part of the qkv projection
    w_qkv = jnp.concatenate([params["w_qkv"][:, :C] * scale,
                             params["w_qkv"][:, C:]], axis=1).astype(bf16)
    b_qkv = jnp.concatenate([params["b_qkv"][:, :C] * scale,
                             params["b_qkv"][:, C:]], axis=1).astype(jnp.float32)
    w_ao = params["w_ao"].astype(bf16)                     # (C, C)   bf16
    w_fc = params["w_fc"].astype(bf16)                     # (C, 4C)  bf16
    w_mo = params["w_mo"].astype(bf16)                     # (4C, C)  bf16

    # FIRE mask: keep bf16 in HBM; do NOT replicate over batch if it is
    # batch-invariant ((nh,T,T) or leading dim 1).  -1e9 stays finite in bf16.
    mask = fire_causal_mask
    if mask.ndim == 3:
        mask = mask[None]
    mask = mask.astype(bf16)
    mask_batched = (mask.shape[0] == B) and (B > 1)

    def cparams(sem):
        return pltpu.CompilerParams(dimension_semantics=sem,
                                    vmem_limit_bytes=vmem_limit)

    # ---------------- kernel 1: LN1 + QKV projection ----------------
    tt1 = _tile(T, q_tile, 8)
    tn1 = _tile(3 * C, qkv_out_tile, 128)
    qkv = pl.pallas_call(
        ln_qkv_kernel,
        out_shape=jax.ShapeDtypeStruct((B, T, 3 * C), bf16),
        grid_spec=pltpu.PrefetchScalarGridSpec(
            num_scalar_prefetch=0,
            grid=(B, T // tt1, (3 * C) // tn1),
            in_specs=[
                pl.BlockSpec((1, tt1, C), lambda b, i, j: (b, i, 0)),   # x
                pl.BlockSpec((1, C), lambda b, i, j: (0, 0)),           # ln1 gamma
                pl.BlockSpec((1, C), lambda b, i, j: (0, 0)),           # ln1 beta
                pl.BlockSpec((C, tn1), lambda b, i, j: (0, j)),         # W_qkv blk
                pl.BlockSpec((1, tn1), lambda b, i, j: (0, j)),         # b_qkv blk
            ],
            out_specs=pl.BlockSpec((1, tt1, tn1), lambda b, i, j: (b, i, j)),
        ),
        compiler_params=cparams(("parallel", "parallel", "parallel")),
    )(x, params["ln1_g"], params["ln1_b"], w_qkv, b_qkv)

    # head split of qkv: pure layout, left to XLA between the kernels.
    # TODO(synk): emit q/k/v head-major directly from kernel 1 to save this
    # HBM round trip on bandwidth-bound v5e.
    def heads(t):
        return t.reshape(B, T, nh, hd).transpose(0, 2, 1, 3)    # (B, nh, T, hd)
    q = heads(qkv[..., 0 * C:1 * C])
    k = heads(qkv[..., 1 * C:2 * C])
    v = heads(qkv[..., 2 * C:3 * C])

    # -------- kernel 2: flash attention + out-proj + residual 1 --------
    tq = _tile(T, q_tile, 8)
    tk = _tile(T, kv_tile, 128)      # tk is a lane dim of the mask block
    nq, nkv = T // tq, T // tk

    def kv_block(qi, ki):
        if causal:
            # clamp to the last KV block this q tile needs -> skipped steps
            # repeat the previous block index and issue no new DMA.
            return jnp.minimum(ki, ((qi + 1) * tq - 1) // tk)
        return ki

    mb = (lambda b: b) if mask_batched else (lambda b: 0)

    attn_in_specs = [
        pl.BlockSpec((1, tq, C), lambda b, qi, ki: (b, qi, 0)),                 # x
        pl.BlockSpec((1, nh, tq, hd), lambda b, qi, ki: (b, 0, qi, 0)),         # q
        pl.BlockSpec((1, nh, tk, hd),
                     lambda b, qi, ki: (b, 0, kv_block(qi, ki), 0)),            # k
        pl.BlockSpec((1, nh, tk, hd),
                     lambda b, qi, ki: (b, 0, kv_block(qi, ki), 0)),            # v
        pl.BlockSpec((1, nh, tq, tk),
                     lambda b, qi, ki: (mb(b), 0, qi, kv_block(qi, ki))),       # mask
        pl.BlockSpec((C, C), lambda b, qi, ki: (0, 0)),                         # W_ao
        pl.BlockSpec((1, C), lambda b, qi, ki: (0, 0)),                         # b_ao
    ]

    x1 = pl.pallas_call(
        _make_attn_kernel(causal),
        out_shape=jax.ShapeDtypeStruct((B, T, C), jnp.float32),  # f32 residual stream
        grid_spec=pltpu.PrefetchScalarGridSpec(
            num_scalar_prefetch=0,
            grid=(B, nq, nkv),
            in_specs=attn_in_specs,
            out_specs=pl.BlockSpec((1, tq, C), lambda b, qi, ki: (b, qi, 0)),
            scratch_shapes=[
                pltpu.VMEM((nh, tq, 1), jnp.float32),    # running max
                pltpu.VMEM((nh, tq, 1), jnp.float32),    # running sum
                pltpu.VMEM((nh, tq, hd), jnp.float32),   # output accumulator
            ],
        ),
        compiler_params=cparams(("parallel", "parallel", "arbitrary")),
    )(x, q, k, v, mask, w_ao, params["b_ao"])

    # -------- kernel 3: LN2 + MLP (4C reduction-tiled) + residual 2 --------
    tt3 = _tile(T, q_tile, 8)
    tff = _tile(4 * C, ff_tile, 128)
    out = pl.pallas_call(
        ln_mlp_kernel,
        out_shape=jax.ShapeDtypeStruct((B, T, C), x.dtype),
        grid_spec=pltpu.PrefetchScalarGridSpec(
            num_scalar_prefetch=0,
            grid=(B, T // tt3, (4 * C) // tff),
            in_specs=[
                pl.BlockSpec((1, tt3, C), lambda b, i, j: (b, i, 0)),   # x1
                pl.BlockSpec((1, C), lambda b, i, j: (0, 0)),           # ln2 gamma
                pl.BlockSpec((1, C), lambda b, i, j: (0, 0)),           # ln2 beta
                pl.BlockSpec((C, tff), lambda b, i, j: (0, j)),         # W_fc blk
                pl.BlockSpec((1, tff), lambda b, i, j: (0, j)),         # b_fc blk
                pl.BlockSpec((tff, C), lambda b, i, j: (j, 0)),         # W_mo blk
                pl.BlockSpec((1, C), lambda b, i, j: (0, 0)),           # b_mo
            ],
            out_specs=pl.BlockSpec((1, tt3, C), lambda b, i, j: (b, i, 0)),
            scratch_shapes=[
                pltpu.VMEM((tt3, C), bf16),          # LN2 activation (reused per j)
                pltpu.VMEM((tt3, C), jnp.float32),   # MLP accumulator
            ],
        ),
        compiler_params=cparams(("parallel", "parallel", "arbitrary")),
    )(x1, params["ln2_g"], params["ln2_b"], w_fc, params["b_fc"],
      w_mo, params["b_mo"])
    return out


def init_params(key, n_embd, n_head):
    C = n_embd
    ks = jax.random.split(key, 8)
    std = 0.02
    return {
        "ln1_g": jnp.ones((1, C), jnp.float32),
        "ln1_b": jnp.zeros((1, C), jnp.float32),
        "w_qkv": std * jax.random.normal(ks[0], (C, 3 * C), jnp.float32),
        "b_qkv": jnp.zeros((1, 3 * C), jnp.float32),
        "w_ao":  std * jax.random.normal(ks[1], (C, C), jnp.float32),
        "b_ao":  jnp.zeros((1, C), jnp.float32),
        "ln2_g": jnp.ones((1, C), jnp.float32),
        "ln2_b": jnp.zeros((1, C), jnp.float32),
        "w_fc":  std * jax.random.normal(ks[2], (C, 4 * C), jnp.float32),
        "b_fc":  jnp.zeros((1, 4 * C), jnp.float32),
        "w_mo":  std * jax.random.normal(ks[3], (4 * C, C), jnp.float32),
        "b_mo":  jnp.zeros((1, C), jnp.float32),
    }


def block_reference(x, mask, params, n_head):
    """Pure-JAX f32 reference with PyTorch Block semantics."""
    B, T, C = x.shape
    nh = n_head
    hd = C // nh

    def ln(v, g, b, eps=1e-5):
        mu = v.mean(-1, keepdims=True)
        var = ((v - mu) ** 2).mean(-1, keepdims=True)
        return (v - mu) / jnp.sqrt(var + eps) * g + b

    h = ln(x, params["ln1_g"][0], params["ln1_b"][0])
    qkv = h @ params["w_qkv"] + params["b_qkv"][0]
    q, k, v = jnp.split(qkv, 3, axis=-1)

    def heads(t):
        return t.reshape(B, T, nh, hd).transpose(0, 2, 1, 3)
    q, k, v = heads(q), heads(k), heads(v)
    s = jnp.einsum('bhqd,bhkd->bhqk', q, k) / math.sqrt(hd) + mask
    p = jax.nn.softmax(s, axis=-1)
    y = jnp.einsum('bhqk,bhkd->bhqd', p, v)
    y = y.transpose(0, 2, 1, 3).reshape(B, T, C)
    y = y @ params["w_ao"] + params["b_ao"][0]
    x1 = x + y
    h2 = ln(x1, params["ln2_g"][0], params["ln2_b"][0])
    f = h2 @ params["w_fc"] + params["b_fc"][0]
    f = 0.5 * f * (1.0 + jnp.tanh(math.sqrt(2.0 / math.pi)
                                  * (f + 0.044715 * f ** 3)))
    return x1 + f @ params["w_mo"] + params["b_mo"][0]


if __name__ == "__main__":
    # Small config: B=2, T=8, n_embd=32, n_head=4 (head_dim=8)
    B, T, C, NH = 2, 8, 32, 4

    root = jax.random.PRNGKey(0)
    k_x, k_bias, k_p = jax.random.split(root, 3)

    x = jax.random.normal(k_x, (B, T, C), jnp.float32)

    # FIRE-style additive mask: batch-invariant relative bias below the
    # diagonal, large negative (masked) above it — exactly what SDPA adds.
    rel_bias = 0.1 * jax.random.normal(k_bias, (1, NH, T, T), jnp.float32)
    causal_tril = jnp.tril(jnp.ones((T, T), jnp.bool_))
    fire_causal_mask = jnp.where(causal_tril[None, None, :, :], rel_bias,
                                 jnp.float32(-1e9))

    params = init_params(k_p, C, NH)

    out = gpt2_block(x, fire_causal_mask, params, n_head=NH)
    jax.block_until_ready(out)
    assert out.shape == (B, T, C)

    # loose tolerance: kernels run MXU matmuls in bf16 (f32 accumulation)
    ref = block_reference(x, fire_causal_mask, params, NH)
    max_err = float(jnp.max(jnp.abs(out - ref)))
    assert max_err < 1e-1, f"max abs error {max_err}"

    print("KERNEL_OK")
</pallas_src>

<mosaic_0001>
module attributes {stable_mosaic.version = 11 : i64} {
  func.func @ln_qkv_kernel(%arg0: i32, %arg1: i32, %arg2: i32, %arg3: memref<1x8x32xf32, #tpu.memory_space<vmem>>, %arg4: memref<1x32xf32, #tpu.memory_space<vmem>>, %arg5: memref<1x32xf32, #tpu.memory_space<vmem>>, %arg6: memref<32x96xbf16, #tpu.memory_space<vmem>>, %arg7: memref<1x96xf32, #tpu.memory_space<vmem>>, %arg8: memref<1x8x96xbf16, #tpu.memory_space<vmem>>) attributes {dimension_semantics = [#tpu.dimension_semantics<parallel>, #tpu.dimension_semantics<parallel>, #tpu.dimension_semantics<parallel>], iteration_bounds = array<i64: 2, 1, 1>, scalar_prefetch = 0 : i64, scratch_operands = 0 : i64, tpu.core_type = #tpu.core_type<tc>, window_params = [{transform_indices = @transform_0, window_bounds = array<i64: 1, 8, 32>}, {pipeline_mode = #tpu.pipeline_mode<synchronous>, transform_indices = @transform_1, window_bounds = array<i64: 1, 32>}, {pipeline_mode = #tpu.pipeline_mode<synchronous>, transform_indices = @transform_2, window_bounds = array<i64: 1, 32>}, {transform_indices = @transform_3, window_bounds = array<i64: 32, 96>}, {transform_indices = @transform_4, window_bounds = array<i64: 1, 96>}, {transform_indices = @transform_5, window_bounds = array<i64: 1, 8, 96>}]} {
    %c0 = arith.constant 0 : index
    %c0_0 = arith.constant 0 : index
    %c0_1 = arith.constant 0 : index
    %0 = vector.load %arg3[%c0, %c0_0, %c0_1] : memref<1x8x32xf32, #tpu.memory_space<vmem>>, vector<1x8x32xf32>
    %1 = vector.shape_cast %0 : vector<1x8x32xf32> to vector<8x32xf32>
    %c0_2 = arith.constant 0 : index
    %c0_3 = arith.constant 0 : index
    %2 = vector.load %arg4[%c0_2, %c0_3] : memref<1x32xf32, #tpu.memory_space<vmem>>, vector<1x32xf32>
    %3 = vector.shape_cast %2 : vector<1x32xf32> to vector<32xf32>
    %c0_4 = arith.constant 0 : index
    %c0_5 = arith.constant 0 : index
    %4 = vector.load %arg5[%c0_4, %c0_5] : memref<1x32xf32, #tpu.memory_space<vmem>>, vector<1x32xf32>
    %5 = vector.shape_cast %4 : vector<1x32xf32> to vector<32xf32>
    %cst = arith.constant dense<0.000000e+00> : vector<8xf32>
    %6 = vector.multi_reduction <add>, %1, %cst [1] : vector<8x32xf32> to vector<8xf32>
    %7 = vector.shape_cast %6 : vector<8xf32> to vector<8x1xf32>
    %cst_6 = arith.constant 3.200000e+01 : f32
    %8 = vector.broadcast %cst_6 : f32 to vector<8x1xf32>
    %9 = arith.divf %7, %8 : vector<8x1xf32>
    %10 = vector.broadcast %9 : vector<8x1xf32> to vector<8x32xf32>
    %11 = arith.subf %1, %10 : vector<8x32xf32>
    %12 = arith.mulf %11, %11 : vector<8x32xf32>
    %cst_7 = arith.constant dense<0.000000e+00> : vector<8xf32>
    %13 = vector.multi_reduction <add>, %12, %cst_7 [1] : vector<8x32xf32> to vector<8xf32>
    %14 = vector.shape_cast %13 : vector<8xf32> to vector<8x1xf32>
    %cst_8 = arith.constant 3.200000e+01 : f32
    %15 = vector.broadcast %cst_8 : f32 to vector<8x1xf32>
    %16 = arith.divf %14, %15 : vector<8x1xf32>
    %17 = vector.broadcast %9 : vector<8x1xf32> to vector<8x32xf32>
    %18 = arith.subf %1, %17 : vector<8x32xf32>
    %cst_9 = arith.constant 9.99999974E-6 : f32
    %19 = vector.broadcast %cst_9 : f32 to vector<8x1xf32>
    %20 = arith.addf %16, %19 : vector<8x1xf32>
    %21 = math.rsqrt %20 : vector<8x1xf32>
    %22 = vector.broadcast %21 : vector<8x1xf32> to vector<8x32xf32>
    %23 = arith.mulf %18, %22 : vector<8x32xf32>
    %24 = vector.shape_cast %3 : vector<32xf32> to vector<1x32xf32>
    %25 = vector.broadcast %24 : vector<1x32xf32> to vector<8x32xf32>
    %26 = arith.mulf %23, %25 : vector<8x32xf32>
    %27 = vector.shape_cast %5 : vector<32xf32> to vector<1x32xf32>
    %28 = vector.broadcast %27 : vector<1x32xf32> to vector<8x32xf32>
    %29 = arith.addf %26, %28 : vector<8x32xf32>
    %30 = arith.truncf %29 : vector<8x32xf32> to vector<8x32xbf16>
    %c0_10 = arith.constant 0 : index
    %c0_11 = arith.constant 0 : index
    %31 = vector.load %arg6[%c0_10, %c0_11] : memref<32x96xbf16, #tpu.memory_space<vmem>>, vector<32x96xbf16>
    %cst_12 = arith.constant dense<0.000000e+00> : vector<8x96xf32>
    %32 = tpu.matmul %30, %31, %cst_12 {dimension_numbers = #tpu.dot_dimension_numbers<[1], [0], [0], [1], [0, 0, 1, 1], [], []>} : vector<8x32xbf16>, vector<32x96xbf16>, vector<8x96xf32> -> vector<8x96xf32>
    %c0_13 = arith.constant 0 : index
    %c0_14 = arith.constant 0 : index
    %33 = vector.load %arg7[%c0_13, %c0_14] : memref<1x96xf32, #tpu.memory_space<vmem>>, vector<1x96xf32>
    %34 = vector.shape_cast %33 : vector<1x96xf32> to vector<96xf32>
    %35 = vector.shape_cast %34 : vector<96xf32> to vector<1x96xf32>
    %36 = vector.broadcast %35 : vector<1x96xf32> to vector<8x96xf32>
    %37 = arith.addf %32, %36 : vector<8x96xf32>
    %38 = arith.truncf %37 : vector<8x96xf32> to vector<8x96xbf16>
    %c0_15 = arith.constant 0 : index
    %c0_16 = arith.constant 0 : index
    %c0_17 = arith.constant 0 : index
    %39 = vector.load %arg8[%c0_15, %c0_16, %c0_17] : memref<1x8x96xbf16, #tpu.memory_space<vmem>>, vector<1x8x96xbf16>
    %40 = vector.shape_cast %39 : vector<1x8x96xbf16> to vector<8x96xbf16>
    %41 = vector.shape_cast %38 : vector<8x96xbf16> to vector<1x8x96xbf16>
    tpu.vector_store %arg8[%c0_15, %c0_16, %c0_17], %41 {strides = array<i32>} : memref<1x8x96xbf16, #tpu.memory_space<vmem>>, vector<1x8x96xbf16>,
    return
  }
  func.func @transform_0(%arg0: i32, %arg1: i32, %arg2: i32) -> (i32, i32, i32) {
    %c0_i32 = arith.constant 0 : i32
    %c0_i32_0 = arith.constant 0 : i32
    return %arg0, %arg1, %c0_i32 : i32, i32, i32
  }
  func.func @transform_1(%arg0: i32, %arg1: i32, %arg2: i32) -> (i32, i32) {
    %c0_i32 = arith.constant 0 : i32
    %c0_i32_0 = arith.constant 0 : i32
    %c0_i32_1 = arith.constant 0 : i32
    return %c0_i32, %c0_i32_0 : i32, i32
  }
  func.func @transform_2(%arg0: i32, %arg1: i32, %arg2: i32) -> (i32, i32) {
    %c0_i32 = arith.constant 0 : i32
    %c0_i32_0 = arith.constant 0 : i32
    %c0_i32_1 = arith.constant 0 : i32
    return %c0_i32, %c0_i32_0 : i32, i32
  }
  func.func @transform_3(%arg0: i32, %arg1: i32, %arg2: i32) -> (i32, i32) {
    %c0_i32 = arith.constant 0 : i32
    %c0_i32_0 = arith.constant 0 : i32
    return %c0_i32, %arg2 : i32, i32
  }
  func.func @transform_4(%arg0: i32, %arg1: i32, %arg2: i32) -> (i32, i32) {
    %c0_i32 = arith.constant 0 : i32
    %c0_i32_0 = arith.constant 0 : i32
    return %c0_i32, %arg2 : i32, i32
  }
  func.func @transform_5(%arg0: i32, %arg1: i32, %arg2: i32) -> (i32, i32, i32) {
    %c0_i32 = arith.constant 0 : i32
    return %arg0, %arg1, %arg2 : i32, i32, i32
  }
}

</mosaic_0001>

<llo_original>
// kernel: tpu_custom_call.1
$region0: #{tpu_custom_call.1}
  #allocation0 [shape = 'u32[]', space=smem, size = 0x4, offset = 0x4, fixed_abs, tag = 'smem constant byte address 0x4 - core index']
  #allocation1 [shape = 'u32[144,128]{1,0:T(1,128)}', space=vmem, size = 0x12000, scoped, tag = 'internal scratch']
  %s0 = inlined_call_operand.hbm [shape: f32[2,8,32], index: 0, kind: input, shape index: {}]
  %s1 = inlined_call_operand.vmem [shape: f32[1,32], index: 1, kind: input, shape index: {}]
  %s2 = inlined_call_operand.vmem [shape: f32[1,32], index: 2, kind: input, shape index: {}]
  %s3 = inlined_call_operand.hbm [shape: bf16[32,96], index: 3, kind: input, shape index: {}]
  %s4 = inlined_call_operand.vmem [shape: f32[1,96], index: 4, kind: input, shape index: {}]
  %s5 = inlined_call_operand.hbm [shape: bf16[2,8,96], index: 5, kind: output, shape index: {}]
  %s6 = sld [smem:[#allocation0]]
  $region61: #{tpu_custom_call.1} parent=0
    _
  %s8 = ssub.s32 1, %s6
  %s9 = scalar_select 0, %s8, %s6
  $region1: #{tpu_custom_call.1} parent=0
    #allocation2 [shape = 'u8[8192]{0}', space=vmem, size = 0x2000, scoped, tag = 'input window, operand 0']
    #allocation3 [shape = 's32[2]{0}', space=sflag, size = 0x8, scoped, tag = 'scoped memory for tpu_custom_call.1']
    #allocation4 [shape = 's32[2]{0}', space=sflag, size = 0x8, scoped, tag = 'scoped memory for tpu_custom_call.1']
    #allocation5 [shape = 'u8[8192]{0}', space=vmem, size = 0x2000, scoped, tag = 'input window, operand 3, single buffered']
    #allocation6 [shape = 's32[1]{0}', space=sflag, size = 0x4, scoped, tag = 'scoped memory for tpu_custom_call.1']
    #allocation7 [shape = 'u8[4096]{0}', space=vmem, size = 0x1000, scoped, tag = 'output window, operand 0']
    %10 = vsyncpa [#allocation3], 0
    %s11 = scalar_lea.sflag [#allocation3], 1
    %12 = vsyncpa %s11, 0
    %13 = vsyncpa [#allocation6], 0
    %14 = vsyncpa [#allocation4], 0
    %s15 = scalar_lea.sflag [#allocation4], 1
    %16 = vsyncpa %s15, 0
    loop: start=0, step=1, limit=4
    $region2: #{tpu_custom_call.1} parent=1 // loop_pre_header
      _
    $region3: #{tpu_custom_call.1} parent=1 // loop_header
      %s18 = sphi 0, %s22
      %p19 = scmp.ge.s32.totalorder %s18, 4
      %s25 = sphi 0, %s44
      %s26 = sphi 0, %s40
      %s27 = sphi 0, %s36
      %s28 = sphi 0, %s25
      %s29 = sphi 0, %s26
      %s30 = sphi 0, %s27
      %s31 = sphi 0, %s28
      %s32 = sphi 0, %s29
      %s33 = sphi 0, %s30
      %s49 = sphi 0, %s51
      %s52 = sphi 0, %s49
      %s53 = sphi 0, %s52
      %s69 = sphi 0, %s53
      %s73 = sphi 0, %s73
      %s75 = sphi 0, %s73
      %s76 = sphi 0, %s75
      %s90 = sphi 0, %s76
      %s94 = sphi 0, %s94
      %s96 = sphi 0, %s94
      %s97 = sphi 0, %s96
      %s111 = sphi 0, %s97
      %s117 = sphi 0, %s119
      %s120 = sphi 0, %s117
      %s121 = sphi 0, %s120
      %s137 = sphi 0, %s121
      %s143 = sphi 0, %s145
      %s146 = sphi 0, %s143
      %s147 = sphi 0, %s146
      %s163 = sphi 0, %s147
      %s173 = sphi 0, %s175
      %s176 = sphi 0, %s173
      %s177 = sphi 0, %s176
      %s193 = sphi 0, %s177
    $region4: #{tpu_custom_call.1} parent=1 // loop_header_branch
      %21 = sbr.rel (%p19) target = $region8
    $region5: #{tpu_custom_call.1} parent=1 // loop_body
      %s23 = ssub.s32 %s18, 1
      %s24 = ssub.s32 %s18, 2
      %s34 = sadd.s32 1, %s27
      %p35 = scmp.ge.s32.totalorder %s34, 1
      %s36 = scalar_select %p35, 0, %s34
      %s37 = sadd.s32 1, %s26
      %s38 = scalar_select %p35, %s37, %s26
      %p39 = scmp.ge.s32.totalorder %s38, 1
      %s40 = scalar_select %p39, 0, %s38
      %s41 = sadd.s32 1, %s25
      %s42 = scalar_select %p39, %s41, %s25
      %p43 = scmp.ge.s32.totalorder %s42, 2
      %s44 = scalar_select %p43, 0, %s42
      %s45 = ssub.s32 %s25, %s44
      %s46 = ssub.s32 %s26, %s40
      %s47 = sor.u32 %s45, %s46
      %p48 = scmp.eq.s32.totalorder %s47, 0
      %s50 = sadd.s32 %s49, 1
      %s51 = scalar_select %p48, %s49, %s50
      %p54 = pneg %p48
      %p55 = scmp.eq.s32.totalorder %s18, 1
      %p56 = por %p54, %p55
      %p57 = scmp.ne.s32.totalorder %s49, %s52
      %p58 = scmp.eq.s32.totalorder %s18, 0
      %p59 = por %p57, %p58
      %p60 = scmp.ne.s32.totalorder %s49, %s52
      %p61 = scmp.eq.s32.totalorder %s23, 1
      %p62 = por %p60, %p61
      %p63 = scmp.ne.s32.totalorder %s52, %s53
      %p64 = scmp.eq.s32.totalorder %s23, 0
      %p65 = por %p63, %p64
      %p66 = scmp.ne.s32.totalorder %s52, %s53
      %p67 = scmp.eq.s32.totalorder %s24, 1
      %p68 = por %p66, %p67
      %p70 = scmp.ne.s32.totalorder %s53, %s69
      %p71 = scmp.eq.s32.totalorder %s24, 0
      %p72 = por %p70, %p71
      %s74 = sadd.s32 %s73, 1
      %p77 = scmp.eq.s32.totalorder %s18, 1
      %p78 = scmp.ne.s32.totalorder %s73, %s75
      %p79 = scmp.eq.s32.totalorder %s18, 0
      %p80 = por %p78, %p79
      %p81 = scmp.ne.s32.totalorder %s73, %s75
      %p82 = scmp.eq.s32.totalorder %s23, 1
      %p83 = por %p81, %p82
      %p84 = scmp.ne.s32.totalorder %s75, %s76
      %p85 = scmp.eq.s32.totalorder %s23, 0
      %p86 = por %p84, %p85
      %p87 = scmp.ne.s32.totalorder %s75, %s76
      %p88 = scmp.eq.s32.totalorder %s24, 1
      %p89 = por %p87, %p88
      %p91 = scmp.ne.s32.totalorder %s76, %s90
      %p92 = scmp.eq.s32.totalorder %s24, 0
      %p93 = por %p91, %p92
      %s95 = sadd.s32 %s94, 1
      %p98 = scmp.eq.s32.totalorder %s18, 1
      %p99 = scmp.ne.s32.totalorder %s94, %s96
      %p100 = scmp.eq.s32.totalorder %s18, 0
      %p101 = por %p99, %p100
      %p102 = scmp.ne.s32.totalorder %s94, %s96
      %p103 = scmp.eq.s32.totalorder %s23, 1
      %p104 = por %p102, %p103
      %p105 = scmp.ne.s32.totalorder %s96, %s97
      %p106 = scmp.eq.s32.totalorder %s23, 0
      %p107 = por %p105, %p106
      %p108 = scmp.ne.s32.totalorder %s96, %s97
      %p109 = scmp.eq.s32.totalorder %s24, 1
      %p110 = por %p108, %p109
      %p112 = scmp.ne.s32.totalorder %s97, %s111
      %p113 = scmp.eq.s32.totalorder %s24, 0
      %p114 = por %p112, %p113
      %s115 = ssub.s32 %s27, %s36
      %p116 = scmp.eq.s32.totalorder %s115, 0
      %s118 = sadd.s32 %s117, 1
      %s119 = scalar_select %p116, %s117, %s118
      %p122 = pneg %p116
      %p123 = scmp.eq.s32.totalorder %s18, 1
      %p124 = por %p122, %p123
      %p125 = scmp.ne.s32.totalorder %s117, %s120
      %p126 = scmp.eq.s32.totalorder %s18, 0
      %p127 = por %p125, %p126
      %p128 = scmp.ne.s32.totalorder %s117, %s120
      %p129 = scmp.eq.s32.totalorder %s23, 1
      %p130 = por %p128, %p129
      %p131 = scmp.ne.s32.totalorder %s120, %s121
      %p132 = scmp.eq.s32.totalorder %s23, 0
      %p133 = por %p131, %p132
      %p134 = scmp.ne.s32.totalorder %s120, %s121
      %p135 = scmp.eq.s32.totalorder %s24, 1
      %p136 = por %p134, %p135
      %p138 = scmp.ne.s32.totalorder %s121, %s137
      %p139 = scmp.eq.s32.totalorder %s24, 0
      %p140 = por %p138, %p139
      %s141 = ssub.s32 %s27, %s36
      %p142 = scmp.eq.s32.totalorder %s141, 0
      %s144 = sadd.s32 %s143, 1
      %s145 = scalar_select %p142, %s143, %s144
      %p148 = pneg %p142
      %p149 = scmp.eq.s32.totalorder %s18, 1
      %p150 = por %p148, %p149
      %p151 = scmp.ne.s32.totalorder %s143, %s146
      %p152 = scmp.eq.s32.totalorder %s18, 0
      %p153 = por %p151, %p152
      %p154 = scmp.ne.s32.totalorder %s143, %s146
      %p155 = scmp.eq.s32.totalorder %s23, 1
      %p156 = por %p154, %p155
      %p157 = scmp.ne.s32.totalorder %s146, %s147
      %p158 = scmp.eq.s32.totalorder %s23, 0
      %p159 = por %p157, %p158
      %p160 = scmp.ne.s32.totalorder %s146, %s147
      %p161 = scmp.eq.s32.totalorder %s24, 1
      %p162 = por %p160, %p161
      %p164 = scmp.ne.s32.totalorder %s147, %s163
      %p165 = scmp.eq.s32.totalorder %s24, 0
      %p166 = por %p164, %p165
      %s167 = ssub.s32 %s25, %s44
      %s168 = ssub.s32 %s26, %s40
      %s169 = sor.u32 %s167, %s168
      %s170 = ssub.s32 %s27, %s36
      %s171 = sor.u32 %s169, %s170
      %p172 = scmp.eq.s32.totalorder %s171, 0
      %s174 = sadd.s32 %s173, 1
      %s175 = scalar_select %p172, %s173, %s174
      %p178 = pneg %p172
      %p179 = scmp.eq.s32.totalorder %s18, 1
      %p180 = por %p178, %p179
      %p181 = scmp.ne.s32.totalorder %s173, %s176
      %p182 = scmp.eq.s32.totalorder %s18, 0
      %p183 = por %p181, %p182
      %p184 = scmp.ne.s32.totalorder %s173, %s176
      %p185 = scmp.eq.s32.totalorder %s23, 1
      %p186 = por %p184, %p185
      %p187 = scmp.ne.s32.totalorder %s176, %s177
      %p188 = scmp.eq.s32.totalorder %s23, 0
      %p189 = por %p187, %p188
      %p190 = scmp.ne.s32.totalorder %s176, %s177
      %p191 = scmp.eq.s32.totalorder %s24, 1
      %p192 = por %p190, %p191
      %p194 = scmp.ne.s32.totalorder %s177, %s193
      %p195 = scmp.eq.s32.totalorder %s24, 0
      %p196 = por %p194, %p195
      %p197 = scmp.le.s32.totalorder 1, %s18
      %p198 = scmp.lt.s32.totalorder %s18, 3
      %p199 = pnand %p197, %p198
      %p200 = pneg %p199
      // Predicated region
      $region9: #{tpu_custom_call.1} parent=5 // pred_check
        _
      $region10: #{tpu_custom_call.1} parent=5 // pred_check_branch
        %202 = sbr.rel (%p199) target = $region12
      $region11: #{tpu_custom_call.1} parent=5 // pred_region
        %s203 = ssub.s32 %s18, 1
        // Predicated region
        $region13: #{tpu_custom_call.1} parent=11 // pred_check
          %p204 = pneg %p86
        $region14: #{tpu_custom_call.1} parent=11 // pred_check_branch
          %206 = sbr.rel (%p204) target = $region16
        $region15: #{tpu_custom_call.1} parent=11 // pred_region
          _
        $region16: #{tpu_custom_call.1} parent=11 // pred_fallthru
          _
        // Predicated region
        $region17: #{tpu_custom_call.1} parent=11 // pred_check
          %p207 = pneg %p107
        $region18: #{tpu_custom_call.1} parent=11 // pred_check_branch
          %209 = sbr.rel (%p207) target = $region20
        $region19: #{tpu_custom_call.1} parent=11 // pred_region
          _
        $region20: #{tpu_custom_call.1} parent=11 // pred_fallthru
          _
        // Predicated region
        $region21: #{tpu_custom_call.1} parent=11 // pred_check
          %p210 = pneg %p133
        $region22: #{tpu_custom_call.1} parent=11 // pred_check_branch
          %212 = sbr.rel (%p210) target = $region24
        $region23: #{tpu_custom_call.1} parent=11 // pred_region
          %s214 = ssub.s32 256, 256
          %215 = vsyncadd [#allocation6], %s214
          %s216 = smul.addr %s30, 64
          %s217 = scalar_lea.hbm %s3, %s216
          %s218 = sshll.u32 [#allocation5], 4
          %s219 = int_to_ptr.vmem [resolvable:$true] %s218
          %224 = dma.hbm_to_vmem [thread:$0]  %s217, 256, %s219, [#allocation6], 64, 64, 4
        $region24: #{tpu_custom_call.1} parent=11 // pred_fallthru
          _
        // Predicated region
        $region25: #{tpu_custom_call.1} parent=11 // pred_check
          %p225 = pneg %p159
        $region26: #{tpu_custom_call.1} parent=11 // pred_check_branch
          %227 = sbr.rel (%p225) target = $region28
        $region27: #{tpu_custom_call.1} parent=11 // pred_region
          %p228 = scmp.lt.s32.totalorder %s30, 0
          %s229 = scalar_select %p228, %s30, 0
          %s230 = scalar_lea.vmem %s4, %s229
        $region28: #{tpu_custom_call.1} parent=11 // pred_fallthru
          _
      $region12: #{tpu_custom_call.1} parent=5 // pred_fallthru
        _
      %p231 = scmp.lt.s32.totalorder %s18, 2
      // Predicated region
      $region29: #{tpu_custom_call.1} parent=5 // pred_check
        %p232 = pneg %p231
      $region30: #{tpu_custom_call.1} parent=5 // pred_check_branch
        %234 = sbr.rel (%p232) target = $region32
      $region31: #{tpu_custom_call.1} parent=5 // pred_region
        // Predicated region
        $region33: #{tpu_custom_call.1} parent=31 // pred_check
          %p235 = pneg %p59
        $region34: #{tpu_custom_call.1} parent=31 // pred_check_branch
          %237 = sbr.rel (%p235) target = $region36
        $region35: #{tpu_custom_call.1} parent=31 // pred_region
          %s238 = sand.u32 %s49, 1
          %s239 = scalar_lea.sflag [#allocation3], %s238
          %s240 = sand.u32 %s49, 1
          %s241 = smul.addr %s240, 8
          %s242 = scalar_lea.vmem [#allocation2], %s241
          %s244 = ssub.s32 128, 128
          %245 = vsyncadd %s239, %s244
          %s246 = sadd.s32 %s26, %s25
          %s247 = smul.addr %s246, 128
          %s248 = scalar_lea.hbm %s0, %s247
          %s250 = sshll.u32 %s242, 4
          %s251 = int_to_ptr.vmem [resolvable:$true] %s250
          %253 = dma.hbm_to_vmem [thread:$0]  %s248, 128, %s251, %s239
        $region36: #{tpu_custom_call.1} parent=31 // pred_fallthru
          _
      $region32: #{tpu_custom_call.1} parent=5 // pred_fallthru
        _
      %p254 = scmp.le.s32.totalorder 1, %s18
      %p255 = scmp.lt.s32.totalorder %s18, 3
      %p256 = pnand %p254, %p255
      %p257 = pneg %p256
      // Predicated region
      $region37: #{tpu_custom_call.1} parent=5 // pred_check
        _
      $region38: #{tpu_custom_call.1} parent=5 // pred_check_branch
        %259 = sbr.rel (%p256) target = $region40
      $region39: #{tpu_custom_call.1} parent=5 // pred_region
        %s260 = ssub.s32 %s18, 1
        %s261 = sand.u32 %s52, 1
        %s262 = scalar_lea.sflag [#allocation3], %s261
        %s263 = sand.u32 %s52, 1
        %s264 = smul.addr %s263, 8
        %s265 = scalar_lea.vmem [#allocation2], %s264
        // Predicated region
        $region41: #{tpu_custom_call.1} parent=39 // pred_check
          %p266 = pneg %p65
        $region42: #{tpu_custom_call.1} parent=39 // pred_check_branch
          %268 = sbr.rel (%p266) target = $region44
        $region43: #{tpu_custom_call.1} parent=39 // pred_region
          %269 = dma.done %s262, 128
        $region44: #{tpu_custom_call.1} parent=39 // pred_fallthru
          _
        // Predicated region
        $region45: #{tpu_custom_call.1} parent=39 // pred_check
          %p270 = pneg %p133
        $region46: #{tpu_custom_call.1} parent=39 // pred_check_branch
          %272 = sbr.rel (%p270) target = $region48
        $region47: #{tpu_custom_call.1} parent=39 // pred_region
          %273 = dma.done [#allocation6], 256
        $region48: #{tpu_custom_call.1} parent=39 // pred_fallthru
          _
        %s274 = sand.u32 %s52, 1
        %s275 = scalar_lea.sflag [#allocation3], %s274
        %s276 = sand.u32 %s52, 1
        %s277 = smul.addr %s276, 8
        %s278 = scalar_lea.vmem [#allocation2], %s277
        %p279 = pneg %p65
        %p280 = pneg %p62
        %p281 = pneg %p86
        %p282 = pneg %p83
        %p283 = pneg %p107
        %p284 = pneg %p104
        %p285 = pneg %p133
        %p286 = pneg %p130
        %p287 = scmp.lt.s32.totalorder %s30, 0
        %s288 = scalar_select %p287, %s30, 0
        %s289 = scalar_lea.vmem %s4, %s288
        %p290 = pneg %p159
        %p291 = pneg %p156
        %p292 = pneg %p189
        %p293 = pneg %p186
        %s294 = sand.u32 %s176, 1
        %s295 = scalar_lea.sflag [#allocation4], %s294
        %s296 = sand.u32 %s176, 1
        %s297 = smul.addr %s296, 4
        %s298 = scalar_lea.vmem [#allocation7], %s297
        %p299 = scmp.lt.s32.totalorder %s30, 0
        %s300 = scalar_select %p299, %s30, 0
        %s301 = scalar_lea.vmem %s4, %s300
        %v303 = vld [vmem:[%s265] sm:$0xff]
        %v304 = vld [vmem:[%s1] sm:$0x1]
        %v305 = vld [vmem:[%s2] sm:$0x1]
        %vm306 = vcmask 261120
        %v307 = vsel %vm306, %v303, 0.0
        %308 = vadd.xlane.f32.xlu0 %v307
        %v309 = vpop.xlane.xlu0 %308
        %v310 = vrcp.pop 32.0
        %v311 = vmul.f32 %v309, %v310
        %v312 = vsub.f32 %v303, %v311
        %v313 = vmul.f32 %v312, %v312
        %v314 = vsel %vm306, %v313, 0.0
        %315 = vadd.xlane.f32.xlu0 %v314
        %v316 = vpop.xlane.xlu0 %315
        %v317 = vmul.f32 %v316, %v310
        %v318 = vadd.f32 %v317, 1e-05
        %v319 = vrsqrt.pop %v318
        %v320 = vmul.f32 %v312, %v319
        %v322 = vlaneseq
        %v323 = vshrl.u32 %v322, 7
        %v324 = vsub.s32 0, %v323
        %v325 = vrot.slane %v304, %v324
        %v327 = vmul.f32 %v320, %v325
        %v329 = vlaneseq
        %v330 = vshrl.u32 %v329, 7
        %v331 = vsub.s32 0, %v330
        %v332 = vrot.slane %v305, %v331
        %v334 = vadd.f32 %v327, %v332
        %v335 = vpack.c.bf16 %v334, %v334
        %v336 = vld [vmem:[#allocation5] sm:$0xf]
        %v337 = vld [vmem:[#allocation5 + $0x4] sm:$0xf]
        %v338 = vld [vmem:[#allocation5 + $0x8] sm:$0xf]
        %v339 = vld [vmem:[#allocation5 + $0xc] sm:$0xf]
        %v340 = vld [vmem:[%s301] sm:$0x1]
        %v342 = vlaneseq
        %v343 = vshrl.u32 %v342, 7
        %v344 = vsub.s32 0, %v343
        %v345 = vrot.slane %v340, %v344
        %v351 = vunpack.c.l.b16 %v336
        %v352 = vunpack.c.l.b16 %v337
        %v353 = vunpack.c.l.b16 %v338
        %v354 = vunpack.c.l.b16 %v339
        %v355 = vpack.c.b16 %v352, %v351
        %v356 = vpack.c.b16 %v354, %v353
        %v360 = vsel %vm306, %v335, 0
        %362 = vmatprep.subr.bf16.mxu0 0
        %363 = vmatpush1.bf16.msra.mxu0 %v355
        %364 = vmatprep.subr.bf16.mxu0 0
        %365 = vmatpush1.bf16.msra.mxu0 %v356
        %366 = vmatprep.subr.bf16.mxu0 0
        %367 = vmatpush1.bf16.msra.mxu0 0
        %368 = vmatprep.subr.bf16.mxu0 0
        %369 = vmatpush1.bf16.msra.mxu0 0
        %370 = vmatprep.subr.bf16.mxu0 0
        %371 = vmatpush1.bf16.msra.mxu0 0
        %372 = vmatprep.subr.bf16.mxu0 0
        %373 = vmatpush1.bf16.msra.mxu0 0
        %374 = vmatprep.subr.bf16.mxu0 0
        %375 = vmatpush1.bf16.msra.mxu0 0
        %376 = vmatprep.subr.bf16.mxu0 0
        %377 = vmatpush1.bf16.msra.mxu0 0
        %378 = vmatprep.subr.bf16.mxu0 0
        %379 = vmatpush1.bf16.msra.mxu0 0
        %380 = vmatprep.subr.bf16.mxu0 0
        %381 = vmatpush1.bf16.msra.mxu0 0
        %382 = vmatprep.subr.bf16.mxu0 0
        %383 = vmatpush1.bf16.msra.mxu0 0
        %384 = vmatprep.subr.bf16.mxu0 0
        %385 = vmatpush1.bf16.msra.mxu0 0
        %386 = vmatprep.subr.bf16.mxu0 0
        %387 = vmatpush1.bf16.msra.mxu0 0
        %388 = vmatprep.subr.bf16.mxu0 0
        %389 = vmatpush1.bf16.msra.mxu0 0
        %390 = vmatprep.subr.bf16.mxu0 0
        %391 = vmatpush1.bf16.msra.mxu0 0
        %392 = vmatprep.subr.bf16.mxu0 0
        %393 = vmatpush1.bf16.msra.mxu0 0
        %394 = vmatprep.mubr.bf16.mxu0 0
        %395 = vmatmul.mubr.bf16.gmra.mrb[0].mxu0 %v360
        %v396 = vpop.f32.mrb[0].mxu0
        %v397 = vadd.f32 %v345, %v396
        %v398 = vpop.f32.mrb[0].mxu0
        %v399 = vpop.f32.mrb[0].mxu0
        %v400 = vpop.f32.mrb[0].mxu0
        %401 = vdwg.mxu0
        %v402 = vpack.c.bf16 %v397, %v397
        %vm403 = vcmask 781312
        %404 = vst.msk [vmem:[%s298] sm:$0xf] %vm403, %v402
        %s405 = sand.u32 %s176, 1
        %s406 = scalar_lea.sflag [#allocation4], %s405
        %s407 = sand.u32 %s176, 1
        %s408 = smul.addr %s407, 4
        %s409 = scalar_lea.vmem [#allocation7], %s408
        // Predicated region
        $region49: #{tpu_custom_call.1} parent=39 // pred_check
          %p410 = pneg %p186
        $region50: #{tpu_custom_call.1} parent=39 // pred_check_branch
          %412 = sbr.rel (%p410) target = $region52
        $region51: #{tpu_custom_call.1} parent=39 // pred_region
          %s414 = ssub.s32 64, 64
          %415 = vsyncadd %s406, %s414
          %s416 = sadd.s32 %s30, %s29
          %s417 = sadd.s32 %s416, %s28
          %s418 = smul.addr %s417, 64
          %s419 = scalar_lea.hbm %s5, %s418
          %s421 = sshll.u32 %s409, 4
          %s422 = int_to_ptr.vmem [resolvable:$true] %s421
          %424 = dma.vmem_to_hbm [thread:$0]  %s422, 64, %s419, %s406
        $region52: #{tpu_custom_call.1} parent=39 // pred_fallthru
          _
      $region40: #{tpu_custom_call.1} parent=5 // pred_fallthru
        _
      %p425 = scmp.le.s32.totalorder 2, %s18
      // Predicated region
      $region53: #{tpu_custom_call.1} parent=5 // pred_check
        %p426 = pneg %p425
      $region54: #{tpu_custom_call.1} parent=5 // pred_check_branch
        %428 = sbr.rel (%p426) target = $region56
      $region55: #{tpu_custom_call.1} parent=5 // pred_region
        %s429 = ssub.s32 %s18, 2
        // Predicated region
        $region57: #{tpu_custom_call.1} parent=55 // pred_check
          %p430 = pneg %p192
        $region58: #{tpu_custom_call.1} parent=55 // pred_check_branch
          %432 = sbr.rel (%p430) target = $region60
        $region59: #{tpu_custom_call.1} parent=55 // pred_region
          %s433 = sand.u32 %s177, 1
          %s434 = scalar_lea.sflag [#allocation4], %s433
          %s435 = sand.u32 %s177, 1
          %s436 = smul.addr %s435, 4
          %s437 = scalar_lea.vmem [#allocation7], %s436
          %438 = dma.done %s434, 64
        $region60: #{tpu_custom_call.1} parent=55 // pred_fallthru
          _
      $region56: #{tpu_custom_call.1} parent=5 // pred_fallthru
        _
    $region6: #{tpu_custom_call.1} parent=1 // loop_footer
      %s22 = sadd.s32 1, %s18
    $region7: #{tpu_custom_call.1} parent=1 // loop_footer_branch
      %17 = sbr.rel target = $region3
    $region8: #{tpu_custom_call.1} parent=1 // loop_exit
      _
    %439 = vsyncpa [#allocation3], 1
    %s440 = scalar_lea.sflag [#allocation3], 1
    %441 = vsyncpa %s440, 1
    %442 = vsyncpa [#allocation6], 1
    %443 = vsyncpa [#allocation4], 1
    %s444 = scalar_lea.sflag [#allocation4], 1
    %445 = vsyncpa %s444, 1

</llo_original>
